<compile_context>
chip_gen: v7x
topology: tpu7x:2x2x1
jax: 0.10.0
libtpu: 0.0.40
codegen_flags: <defaults>
</compile_context>

<pallas_src>
import functools

import numpy as np
import jax
import jax.numpy as jnp
from jax.experimental import pallas as pl
from jax.experimental.pallas import tpu as pltpu


# ----------------------------------------------------------------------------
# sizing helpers (generation-aware VMEM budget -> tile widths)
# ----------------------------------------------------------------------------
def _cdiv(a, b):
    return -(-a // b)


def _tpu_vmem_capacity():
    """Per-core VMEM bytes; conservative fallback (v7x per-TC) if the query fails."""
    try:
        cap = int(pltpu.get_tpu_info().vmem_capacity_bytes)
        if cap > 0:
            return cap
    except Exception:
        pass
    return 64 << 20


def _round_tile(t, lo=128, hi=32768):
    """Clamp to [lo, hi] and round down to a multiple of 128 lanes."""
    t = int(max(lo, min(hi, t)))
    return max(lo, (t // 128) * 128)


# ----------------------------------------------------------------------------
# Kernel 1: softmax over channels + per-class foreground / error maps (tiled)
# ----------------------------------------------------------------------------
def _softmax_err_kernel(x_ref, lab_ref, err_ref, fg_ref, gtsp_ref, *,
                        ignore_index, n_valid, ragged):
    x = x_ref[0].astype(jnp.float32)                       # (C, Tn) logits (native dtype in HBM)
    labels = lab_ref[0]                                    # (1, Tn) int32

    # softmax over the class axis (axis 0); keep f32 on the VPU/EUP path (v5e-safe).
    m = jnp.max(x, axis=0, keepdims=True)
    e = jnp.exp(x - m)
    probs = e / jnp.sum(e, axis=0, keepdims=True)          # (C, Tn)

    C, Tn = x.shape
    cls = jax.lax.broadcasted_iota(jnp.int32, (C, Tn), 0)  # class id per row
    valid = labels != ignore_index                         # (1, Tn)
    if ragged:
        # ragged spatial tail handled in-kernel (no jnp.pad HBM pass in the wrapper)
        col = jax.lax.broadcasted_iota(jnp.int32, (1, Tn), 1)
        valid = valid & ((col + pl.program_id(1) * Tn) < n_valid)

    fg = jnp.where((cls == labels) & valid, 1.0, 0.0)      # (C, Tn) 0/1 f32
    err = jnp.where(valid, jnp.abs(fg - probs), 0.0)

    err_ref[...] = err.astype(err_ref.dtype)
    fg_ref[...] = fg.astype(fg_ref.dtype)                  # bf16, exact for 0/1

    # Per-tile per-class foreground counts (lane 0 only): avoids a full (C, N)
    # re-read of fg in the wrapper just to compute gts.
    lane = jax.lax.broadcasted_iota(jnp.int32, (1, 128), 1)
    tile_sum = jnp.sum(fg, axis=1, keepdims=True)          # (C, 1)
    gtsp_ref[...] = jnp.where(lane == 0, tile_sum, 0.0).astype(gtsp_ref.dtype)


# ----------------------------------------------------------------------------
# Kernel 2: carried Lovasz gradient along the sorted axis + per-class dot
# ----------------------------------------------------------------------------
def _lovasz_kernel(gts_ref, err_ref, fg_ref, out_ref,
                   carry_ref, prevjac_ref, loss_ref, *, n_valid, ragged):
    j = pl.program_id(1)
    nt = pl.num_programs(1)

    @pl.when(j == 0)
    def _():
        carry_ref[...] = jnp.zeros_like(carry_ref)
        prevjac_ref[...] = jnp.zeros_like(prevjac_ref)
        loss_ref[...] = jnp.zeros_like(loss_ref)

    err = err_ref[...]                                     # (cb, Tn) f32, sorted desc
    fg = fg_ref[...].astype(jnp.float32)                   # (cb, Tn) 0/1, same perm
    gts = gts_ref[...]                                     # (cb, 1)  total fg / class
    cb, Tn = err.shape

    col = jax.lax.broadcasted_iota(jnp.int32, (1, Tn), 1)  # single lane iota, reused
    gcol = col + j * Tn                                    # global 0-indexed position

    if ragged:
        inb = gcol < n_valid
        err = jnp.where(inb, err, 0.0)
        fg = jnp.where(inb, fg, 0.0)

    # In-tile inclusive prefix sum along lanes: Hillis-Steele scan of log2(Tn)
    # pltpu.roll (XLU) stages; the stage mask is a (1, Tn) compare broadcast over
    # the class rows (C-times fewer VALU compares than a (C, Tn) mask).
    # TODO(synk): if this still saturates VALU/XLU on v6e, offload the in-tile
    # cumsum to the idle MXU via per-256-lane-chunk upper-triangular matmuls.
    cum = fg
    s = 1
    while s < Tn:
        shifted = pltpu.roll(cum, shift=s, axis=1)
        cum = cum + jnp.where(col >= s, shifted, 0.0)
        s *= 2

    cum = cum + carry_ref[...]                             # global inclusive prefix
    pos = (gcol + 1).astype(jnp.float32)                   # global 1-indexed position

    intersection = gts - cum
    union = gts + (pos - cum)                              # >= 1 always
    jac = 1.0 - intersection / union                       # (cb, Tn)

    # lovasz_grad: grad[i] = jac[i] - jac[i-1]; carry jac across tile boundary.
    prev = pltpu.roll(jac, shift=1, axis=1)
    prev = jnp.where(col == 0, prevjac_ref[...], prev)
    grad = jac - prev

    loss_ref[...] += jnp.sum(err * grad, axis=1, keepdims=True)
    carry_ref[...] += jnp.sum(fg, axis=1, keepdims=True)
    prevjac_ref[...] = jac[:, Tn - 1:]                     # last column, (cb, 1)

    @pl.when(j == nt - 1)
    def _():
        out_ref[...] = loss_ref[...]                       # per-class loss, (cb, 1)


# ----------------------------------------------------------------------------
# Wrapper: kernel 1, fused key/value sort, kernel 2, 'present'-class average
# ----------------------------------------------------------------------------
def lovasz_softmax_loss(output, target, ignore_index=255):
    B, C, H, W = output.shape
    HW = H * W

    x = output.reshape(B, C, HW)                           # native dtype: no f32 pre-cast pass
    lab = target.reshape(B, 1, HW).astype(jnp.int32)
    # TODO(synk): labels could travel as uint8 (4x less DMA) when C < 256 and
    # ignore_index < 256; kept int32 here for generality.

    if HW < 128:                                           # rare tiny-image fallback only
        pad = 128 - HW
        x = jnp.pad(x, ((0, 0), (0, 0), (0, pad)))
        lab = jnp.pad(lab, ((0, 0), (0, 0), (0, pad)),
                      constant_values=ignore_index)
        HW = 128

    vmem_cap = _tpu_vmem_capacity()
    budget = vmem_cap // 2                                 # pipeline working-set budget
    vmem_limit = int(min(0.7 * vmem_cap, vmem_cap - (8 << 20)))

    # ---- kernel 1: softmax + err/fg, pooled lane-dense (C, Npool) outputs ----
    in_b = jnp.dtype(x.dtype).itemsize
    per_col1 = 2 * (C * in_b + 4 + 6 * C) + 24 * C         # dbl-buffered IO + f32 temps
    tn1 = _round_tile(budget // per_col1, lo=128, hi=32768)
    tn1 = min(tn1, (HW // 128) * 128)
    nj = _cdiv(HW, tn1)
    ragged1 = (HW % tn1) != 0
    Npool = B * nj * tn1

    err, fg, gtsp = pl.pallas_call(
        functools.partial(_softmax_err_kernel, ignore_index=ignore_index,
                          n_valid=HW, ragged=ragged1),
        grid=(B, nj),
        in_specs=[
            pl.BlockSpec((1, C, tn1), lambda b, j: (b, 0, j)),
            pl.BlockSpec((1, 1, tn1), lambda b, j: (b, 0, j)),
        ],
        out_specs=(
            pl.BlockSpec((C, tn1), lambda b, j: (0, b * nj + j)),
            pl.BlockSpec((C, tn1), lambda b, j: (0, b * nj + j)),
            pl.BlockSpec((C, 128), lambda b, j: (0, b * nj + j)),
        ),
        out_shape=(
            jax.ShapeDtypeStruct((C, Npool), jnp.float32),
            jax.ShapeDtypeStruct((C, Npool), jnp.bfloat16),
            jax.ShapeDtypeStruct((C, 128 * B * nj), jnp.float32),
        ),
        compiler_params=pltpu.CompilerParams(
            dimension_semantics=("parallel", "parallel"),
            vmem_limit_bytes=vmem_limit,
        ),
    )(x, lab)

    gts = jnp.sum(gtsp, axis=1, keepdims=True)             # (C, 1), tiny reduction

    # TODO(synk): the descending sort (torch.sort) has no Pallas TPU primitive; a
    # single fused key/value XLA sort replaces argsort + two full-width gathers.
    # err stays f32 so ignored/padded zero-err columns sort strictly last.
    neg_err_sorted, fg_sorted = jax.lax.sort(
        (-err, fg), dimension=1, num_keys=1, is_stable=True)
    err_sorted = -neg_err_sorted

    # ---- kernel 2: blocked, carried Lovasz scan over the sorted axis ----
    # Optional class-block "parallel" axis (feeds v7x's 2nd TensorCore) when C
    # splits cleanly into >=8-row blocks; otherwise a single class block.
    cb = C // 2 if (C % 16 == 0 and C >= 16) else C
    ncb = C // cb

    per_col2 = 44 * cb                                     # dbl-buffered IO + scan temps
    tn2 = _round_tile(budget // per_col2, lo=128, hi=16384)
    tn2 = min(tn2, Npool)
    nt = _cdiv(Npool, tn2)
    ragged2 = (Npool % tn2) != 0

    loss_c = pl.pallas_call(
        functools.partial(_lovasz_kernel, n_valid=Npool, ragged=ragged2),
        grid=(ncb, nt),
        in_specs=[
            pl.BlockSpec((cb, 1), lambda ci, j: (ci, 0)),
            pl.BlockSpec((cb, tn2), lambda ci, j: (ci, j)),
            pl.BlockSpec((cb, tn2), lambda ci, j: (ci, j)),
        ],
        out_specs=pl.BlockSpec((cb, 1), lambda ci, j: (ci, 0)),
        out_shape=jax.ShapeDtypeStruct((C, 1), jnp.float32),
        scratch_shapes=[
            pltpu.VMEM((cb, 1), jnp.float32),   # running fg prefix-sum carry
            pltpu.VMEM((cb, 1), jnp.float32),   # previous tile's last jaccard
            pltpu.VMEM((cb, 1), jnp.float32),   # per-class loss accumulator
        ],
        compiler_params=pltpu.CompilerParams(
            dimension_semantics=("parallel", "arbitrary"),
            vmem_limit_bytes=vmem_limit,
        ),
    )(gts, err_sorted, fg_sorted)

    # classes == 'present': only average over classes with foreground pixels.
    present = gts[:, 0] > 0.0
    cnt = jnp.sum(present.astype(jnp.float32))
    total = jnp.sum(jnp.where(present, loss_c[:, 0], 0.0))
    return jnp.where(cnt > 0.0, total / jnp.maximum(cnt, 1.0), 0.0)


# ----------------------------------------------------------------------------
# Pure numpy reference (mirrors the original lovasz_softmax implementation)
# ----------------------------------------------------------------------------
def _numpy_reference(output, target, ignore):
    B, C, H, W = output.shape
    x = output.astype(np.float64)
    x = x - x.max(axis=1, keepdims=True)
    p = np.exp(x)
    p = p / p.sum(axis=1, keepdims=True)
    probas = p.transpose(0, 2, 3, 1).reshape(-1, C)
    labels = target.reshape(-1)
    valid = labels != ignore
    probas = probas[valid]
    labels = labels[valid]
    losses = []
    for c in range(C):
        fg = (labels == c).astype(np.float64)
        if fg.sum() == 0:
            continue
        errors = np.abs(fg - probas[:, c])
        perm = np.argsort(-errors, kind="stable")
        errors_sorted = errors[perm]
        fg_sorted = fg[perm]
        gts = fg_sorted.sum()
        inter = gts - np.cumsum(fg_sorted)
        union = gts + np.cumsum(1.0 - fg_sorted)
        jac = 1.0 - inter / union
        jac[1:] = jac[1:] - jac[:-1]
        losses.append(float(np.dot(errors_sorted, jac)))
    return float(np.mean(losses)) if losses else 0.0


if __name__ == "__main__":
    key = jax.random.PRNGKey(0)
    k1, k2, k3 = jax.random.split(key, 3)

    B, C, H, W = 2, 4, 16, 16
    ignore_index = 255

    output = jax.random.normal(k1, (B, C, H, W), dtype=jnp.float32)
    target = jax.random.randint(k2, (B, H, W), 0, C, dtype=jnp.int32)
    # sprinkle in some ignored pixels to exercise the ignore path
    ignore_mask = jax.random.uniform(k3, (B, H, W)) < 0.1
    target = jnp.where(ignore_mask, ignore_index, target)

    loss_fn = jax.jit(lovasz_softmax_loss, static_argnums=(2,))
    loss = jax.block_until_ready(loss_fn(output, target, ignore_index))

    ref = _numpy_reference(np.asarray(output), np.asarray(target), ignore_index)
    assert abs(float(loss) - ref) < 1e-4, (float(loss), ref)

    print("KERNEL_OK")
</pallas_src>

<mosaic_0001>
module attributes {stable_mosaic.version = 11 : i64} {
  func.func @_softmax_err_kernel(%arg0: i32, %arg1: i32, %arg2: memref<1x4x256xf32, #tpu.memory_space<vmem>>, %arg3: memref<1x1x256xi32, #tpu.memory_space<vmem>>, %arg4: memref<4x256xf32, #tpu.memory_space<vmem>>, %arg5: memref<4x256xbf16, #tpu.memory_space<vmem>>, %arg6: memref<4x128xf32, #tpu.memory_space<vmem>>) attributes {dimension_semantics = [#tpu.dimension_semantics<parallel>, #tpu.dimension_semantics<parallel>], iteration_bounds = array<i64: 2, 1>, scalar_prefetch = 0 : i64, scratch_operands = 0 : i64, tpu.core_type = #tpu.core_type<tc>, window_params = [{transform_indices = @transform_0, window_bounds = array<i64: 1, 4, 256>}, {transform_indices = @transform_1, window_bounds = array<i64: 1, 1, 256>}, {transform_indices = @transform_2, window_bounds = array<i64: 4, 256>}, {transform_indices = @transform_3, window_bounds = array<i64: 4, 256>}, {transform_indices = @transform_4, window_bounds = array<i64: 4, 128>}]} {
    %c0 = arith.constant 0 : index
    %c0_0 = arith.constant 0 : index
    %c0_1 = arith.constant 0 : index
    %0 = vector.load %arg2[%c0, %c0_0, %c0_1] : memref<1x4x256xf32, #tpu.memory_space<vmem>>, vector<1x4x256xf32>
    %1 = vector.shape_cast %0 : vector<1x4x256xf32> to vector<4x256xf32>
    %c0_2 = arith.constant 0 : index
    %c0_3 = arith.constant 0 : index
    %c0_4 = arith.constant 0 : index
    %2 = vector.load %arg3[%c0_2, %c0_3, %c0_4] : memref<1x1x256xi32, #tpu.memory_space<vmem>>, vector<1x1x256xi32>
    %3 = vector.shape_cast %2 : vector<1x1x256xi32> to vector<1x256xi32>
    %cst = arith.constant dense<0xFF800000> : vector<256xf32>
    %4 = vector.multi_reduction <maximumf>, %1, %cst [0] : vector<4x256xf32> to vector<256xf32>
    %5 = vector.shape_cast %4 : vector<256xf32> to vector<1x256xf32>
    %6 = vector.broadcast %5 : vector<1x256xf32> to vector<4x256xf32>
    %7 = arith.subf %1, %6 : vector<4x256xf32>
    %8 = math.exp %7 : vector<4x256xf32>
    %cst_5 = arith.constant dense<0.000000e+00> : vector<256xf32>
    %9 = vector.multi_reduction <add>, %8, %cst_5 [0] : vector<4x256xf32> to vector<256xf32>
    %10 = vector.shape_cast %9 : vector<256xf32> to vector<1x256xf32>
    %11 = vector.broadcast %10 : vector<1x256xf32> to vector<4x256xf32>
    %12 = arith.divf %8, %11 : vector<4x256xf32>
    %13 = tpu.iota {dimensions = array<i32: 0>} : vector<4x256xi32>
    %c255_i32 = arith.constant 255 : i32
    %14 = vector.broadcast %c255_i32 : i32 to vector<1x256xi32>
    %15 = arith.cmpi ne, %3, %14 : vector<1x256xi32>
    %16 = vector.broadcast %3 : vector<1x256xi32> to vector<4x256xi32>
    %17 = arith.cmpi eq, %13, %16 : vector<4x256xi32>
    %18 = vector.broadcast %15 : vector<1x256xi1> to vector<4x256xi1>
    %19 = arith.andi %17, %18 : vector<4x256xi1>
    %cst_6 = arith.constant 1.000000e+00 : f32
    %cst_7 = arith.constant 0.000000e+00 : f32
    %20 = vector.broadcast %cst_6 : f32 to vector<4x256xf32>
    %21 = vector.broadcast %cst_7 : f32 to vector<4x256xf32>
    %22 = arith.select %19, %20, %21 : vector<4x256xi1>, vector<4x256xf32>
    %23 = arith.subf %22, %12 : vector<4x256xf32>
    %24 = math.absf %23 : vector<4x256xf32>
    %cst_8 = arith.constant 0.000000e+00 : f32
    %25 = vector.shape_cast %15 : vector<1x256xi1> to vector<1x256xi1>
    %26 = vector.broadcast %25 : vector<1x256xi1> to vector<4x256xi1>
    %27 = vector.broadcast %cst_8 : f32 to vector<4x256xf32>
    %28 = arith.select %26, %24, %27 : vector<4x256xi1>, vector<4x256xf32>
    %c0_9 = arith.constant 0 : index
    %c0_10 = arith.constant 0 : index
    %29 = vector.load %arg4[%c0_9, %c0_10] : memref<4x256xf32, #tpu.memory_space<vmem>>, vector<4x256xf32>
    tpu.vector_store %arg4[%c0_9, %c0_10], %28 {strides = array<i32>} : memref<4x256xf32, #tpu.memory_space<vmem>>, vector<4x256xf32>,
    %30 = arith.truncf %22 : vector<4x256xf32> to vector<4x256xbf16>
    %c0_11 = arith.constant 0 : index
    %c0_12 = arith.constant 0 : index
    %31 = vector.load %arg5[%c0_11, %c0_12] : memref<4x256xbf16, #tpu.memory_space<vmem>>, vector<4x256xbf16>
    tpu.vector_store %arg5[%c0_11, %c0_12], %30 {strides = array<i32>} : memref<4x256xbf16, #tpu.memory_space<vmem>>, vector<4x256xbf16>,
    %32 = tpu.iota {dimensions = array<i32: 1>} : vector<1x128xi32>
    %cst_13 = arith.constant dense<0.000000e+00> : vector<4xf32>
    %33 = vector.multi_reduction <add>, %22, %cst_13 [1] : vector<4x256xf32> to vector<4xf32>
    %34 = vector.shape_cast %33 : vector<4xf32> to vector<4x1xf32>
    %c0_i32 = arith.constant 0 : i32
    %35 = vector.broadcast %c0_i32 : i32 to vector<1x128xi32>
    %36 = arith.cmpi eq, %32, %35 : vector<1x128xi32>
    %cst_14 = arith.constant 0.000000e+00 : f32
    %37 = vector.shape_cast %36 : vector<1x128xi1> to vector<1x128xi1>
    %38 = vector.broadcast %37 : vector<1x128xi1> to vector<4x128xi1>
    %39 = vector.shape_cast %34 : vector<4x1xf32> to vector<4x1xf32>
    %40 = vector.broadcast %39 : vector<4x1xf32> to vector<4x128xf32>
    %41 = vector.broadcast %cst_14 : f32 to vector<4x128xf32>
    %42 = arith.select %38, %40, %41 : vector<4x128xi1>, vector<4x128xf32>
    %c0_15 = arith.constant 0 : index
    %c0_16 = arith.constant 0 : index
    %43 = vector.load %arg6[%c0_15, %c0_16] : memref<4x128xf32, #tpu.memory_space<vmem>>, vector<4x128xf32>
    tpu.vector_store %arg6[%c0_15, %c0_16], %42 {strides = array<i32>} : memref<4x128xf32, #tpu.memory_space<vmem>>, vector<4x128xf32>,
    return
  }
  func.func @transform_0(%arg0: i32, %arg1: i32) -> (i32, i32, i32) {
    %c0_i32 = arith.constant 0 : i32
    %c0_i32_0 = arith.constant 0 : i32
    return %arg0, %c0_i32, %arg1 : i32, i32, i32
  }
  func.func @transform_1(%arg0: i32, %arg1: i32) -> (i32, i32, i32) {
    %c0_i32 = arith.constant 0 : i32
    %c0_i32_0 = arith.constant 0 : i32
    return %arg0, %c0_i32, %arg1 : i32, i32, i32
  }
  func.func @transform_2(%arg0: i32, %arg1: i32) -> (i32, i32) {
    %c1_i32 = arith.constant 1 : i32
    %0 = arith.muli %arg0, %c1_i32 : i32
    %1 = arith.addi %0, %arg1 : i32
    %c0_i32 = arith.constant 0 : i32
    %c0_i32_0 = arith.constant 0 : i32
    return %c0_i32, %1 : i32, i32
  }
  func.func @transform_3(%arg0: i32, %arg1: i32) -> (i32, i32) {
    %c1_i32 = arith.constant 1 : i32
    %0 = arith.muli %arg0, %c1_i32 : i32
    %1 = arith.addi %0, %arg1 : i32
    %c0_i32 = arith.constant 0 : i32
    %c0_i32_0 = arith.constant 0 : i32
    return %c0_i32, %1 : i32, i32
  }
  func.func @transform_4(%arg0: i32, %arg1: i32) -> (i32, i32) {
    %c1_i32 = arith.constant 1 : i32
    %0 = arith.muli %arg0, %c1_i32 : i32
    %1 = arith.addi %0, %arg1 : i32
    %c0_i32 = arith.constant 0 : i32
    %c0_i32_0 = arith.constant 0 : i32
    return %c0_i32, %1 : i32, i32
  }
}

module attributes {stable_mosaic.version = 11 : i64} {
  func.func @_lovasz_kernel(%arg0: i32, %arg1: i32, %arg2: memref<4x1xf32, #tpu.memory_space<vmem>>, %arg3: memref<4x512xf32, #tpu.memory_space<vmem>>, %arg4: memref<4x512xbf16, #tpu.memory_space<vmem>>, %arg5: memref<4x1xf32, #tpu.memory_space<vmem>>, %arg6: memref<4x1xf32, #tpu.memory_space<vmem>>, %arg7: memref<4x1xf32, #tpu.memory_space<vmem>>, %arg8: memref<4x1xf32, #tpu.memory_space<vmem>>) attributes {dimension_semantics = [#tpu.dimension_semantics<parallel>, #tpu.dimension_semantics<arbitrary>], iteration_bounds = array<i64: 1, 1>, scalar_prefetch = 0 : i64, scratch_operands = 3 : i64, tpu.core_type = #tpu.core_type<tc>, window_params = [{transform_indices = @transform_0, window_bounds = array<i64: 4, 1>}, {transform_indices = @transform_1, window_bounds = array<i64: 4, 512>}, {transform_indices = @transform_2, window_bounds = array<i64: 4, 512>}, {transform_indices = @transform_3, window_bounds = array<i64: 4, 1>}]} {
    %c0_i32 = arith.constant 0 : i32
    %0 = arith.cmpi eq, %arg1, %c0_i32 : i32
    %1 = arith.extui %0 : i1 to i32
    %c0_i32_0 = arith.constant 0 : i32
    %2 = arith.cmpi ne, %1, %c0_i32_0 : i32
    scf.if %2 {
      %cst_45 = arith.constant 0.000000e+00 : f32
      %124 = vector.broadcast %cst_45 : f32 to vector<4x1xf32>
      %c0_46 = arith.constant 0 : index
      %c0_47 = arith.constant 0 : index
      %125 = vector.load %arg6[%c0_46, %c0_47] : memref<4x1xf32, #tpu.memory_space<vmem>>, vector<4x1xf32>
      tpu.vector_store %arg6[%c0_46, %c0_47], %124 {strides = array<i32>} : memref<4x1xf32, #tpu.memory_space<vmem>>, vector<4x1xf32>,
      %cst_48 = arith.constant 0.000000e+00 : f32
      %126 = vector.broadcast %cst_48 : f32 to vector<4x1xf32>
      %c0_49 = arith.constant 0 : index
      %c0_50 = arith.constant 0 : index
      %127 = vector.load %arg7[%c0_49, %c0_50] : memref<4x1xf32, #tpu.memory_space<vmem>>, vector<4x1xf32>
      tpu.vector_store %arg7[%c0_49, %c0_50], %126 {strides = array<i32>} : memref<4x1xf32, #tpu.memory_space<vmem>>, vector<4x1xf32>,
      %cst_51 = arith.constant 0.000000e+00 : f32
      %128 = vector.broadcast %cst_51 : f32 to vector<4x1xf32>
      %c0_52 = arith.constant 0 : index
      %c0_53 = arith.constant 0 : index
      %129 = vector.load %arg8[%c0_52, %c0_53] : memref<4x1xf32, #tpu.memory_space<vmem>>, vector<4x1xf32>
      tpu.vector_store %arg8[%c0_52, %c0_53], %128 {strides = array<i32>} : memref<4x1xf32, #tpu.memory_space<vmem>>, vector<4x1xf32>,
    } else {
    }
    %c0 = arith.constant 0 : index
    %c0_1 = arith.constant 0 : index
    %3 = vector.load %arg3[%c0, %c0_1] : memref<4x512xf32, #tpu.memory_space<vmem>>, vector<4x512xf32>
    %c0_2 = arith.constant 0 : index
    %c0_3 = arith.constant 0 : index
    %4 = vector.load %arg4[%c0_2, %c0_3] : memref<4x512xbf16, #tpu.memory_space<vmem>>, vector<4x512xbf16>
    %5 = arith.extf %4 : vector<4x512xbf16> to vector<4x512xf32>
    %c0_4 = arith.constant 0 : index
    %c0_5 = arith.constant 0 : index
    %6 = vector.load %arg2[%c0_4, %c0_5] : memref<4x1xf32, #tpu.memory_space<vmem>>, vector<4x1xf32>
    %7 = tpu.iota {dimensions = array<i32: 1>} : vector<1x512xi32>
    %c512_i32 = arith.constant 512 : i32
    %8 = arith.muli %arg1, %c512_i32 : i32
    %9 = vector.broadcast %8 : i32 to vector<1x512xi32>
    %10 = arith.addi %7, %9 : vector<1x512xi32>
    %c1_i32 = arith.constant 1 : i32
    %11 = tpu.dynamic_rotate %5 by %c1_i32 dim 1 : vector<4x512xf32>, i32 -> vector<4x512xf32>
    %c1_i32_6 = arith.constant 1 : i32
    %12 = vector.broadcast %c1_i32_6 : i32 to vector<1x512xi32>
    %13 = arith.cmpi sge, %7, %12 : vector<1x512xi32>
    %cst = arith.constant 0.000000e+00 : f32
    %14 = vector.shape_cast %13 : vector<1x512xi1> to vector<1x512xi1>
    %15 = vector.broadcast %14 : vector<1x512xi1> to vector<4x512xi1>
    %16 = vector.broadcast %cst : f32 to vector<4x512xf32>
    %17 = arith.select %15, %11, %16 : vector<4x512xi1>, vector<4x512xf32>
    %18 = arith.addf %5, %17 : vector<4x512xf32>
    %c2_i32 = arith.constant 2 : i32
    %19 = tpu.dynamic_rotate %18 by %c2_i32 dim 1 : vector<4x512xf32>, i32 -> vector<4x512xf32>
    %c2_i32_7 = arith.constant 2 : i32
    %20 = vector.broadcast %c2_i32_7 : i32 to vector<1x512xi32>
    %21 = arith.cmpi sge, %7, %20 : vector<1x512xi32>
    %cst_8 = arith.constant 0.000000e+00 : f32
    %22 = vector.shape_cast %21 : vector<1x512xi1> to vector<1x512xi1>
    %23 = vector.broadcast %22 : vector<1x512xi1> to vector<4x512xi1>
    %24 = vector.broadcast %cst_8 : f32 to vector<4x512xf32>
    %25 = arith.select %23, %19, %24 : vector<4x512xi1>, vector<4x512xf32>
    %26 = arith.addf %18, %25 : vector<4x512xf32>
    %c4_i32 = arith.constant 4 : i32
    %27 = tpu.dynamic_rotate %26 by %c4_i32 dim 1 : vector<4x512xf32>, i32 -> vector<4x512xf32>
    %c4_i32_9 = arith.constant 4 : i32
    %28 = vector.broadcast %c4_i32_9 : i32 to vector<1x512xi32>
    %29 = arith.cmpi sge, %7, %28 : vector<1x512xi32>
    %cst_10 = arith.constant 0.000000e+00 : f32
    %30 = vector.shape_cast %29 : vector<1x512xi1> to vector<1x512xi1>
    %31 = vector.broadcast %30 : vector<1x512xi1> to vector<4x512xi1>
    %32 = vector.broadcast %cst_10 : f32 to vector<4x512xf32>
    %33 = arith.select %31, %27, %32 : vector<4x512xi1>, vector<4x512xf32>
    %34 = arith.addf %26, %33 : vector<4x512xf32>
    %c8_i32 = arith.constant 8 : i32
    %35 = tpu.dynamic_rotate %34 by %c8_i32 dim 1 : vector<4x512xf32>, i32 -> vector<4x512xf32>
    %c8_i32_11 = arith.constant 8 : i32
    %36 = vector.broadcast %c8_i32_11 : i32 to vector<1x512xi32>
    %37 = arith.cmpi sge, %7, %36 : vector<1x512xi32>
    %cst_12 = arith.constant 0.000000e+00 : f32
    %38 = vector.shape_cast %37 : vector<1x512xi1> to vector<1x512xi1>
    %39 = vector.broadcast %38 : vector<1x512xi1> to vector<4x512xi1>
    %40 = vector.broadcast %cst_12 : f32 to vector<4x512xf32>
    %41 = arith.select %39, %35, %40 : vector<4x512xi1>, vector<4x512xf32>
    %42 = arith.addf %34, %41 : vector<4x512xf32>
    %c16_i32 = arith.constant 16 : i32
    %43 = tpu.dynamic_rotate %42 by %c16_i32 dim 1 : vector<4x512xf32>, i32 -> vector<4x512xf32>
    %c16_i32_13 = arith.constant 16 : i32
    %44 = vector.broadcast %c16_i32_13 : i32 to vector<1x512xi32>
    %45 = arith.cmpi sge, %7, %44 : vector<1x512xi32>
    %cst_14 = arith.constant 0.000000e+00 : f32
    %46 = vector.shape_cast %45 : vector<1x512xi1> to vector<1x512xi1>
    %47 = vector.broadcast %46 : vector<1x512xi1> to vector<4x512xi1>
    %48 = vector.broadcast %cst_14 : f32 to vector<4x512xf32>
    %49 = arith.select %47, %43, %48 : vector<4x512xi1>, vector<4x512xf32>
    %50 = arith.addf %42, %49 : vector<4x512xf32>
    %c32_i32 = arith.constant 32 : i32
    %51 = tpu.dynamic_rotate %50 by %c32_i32 dim 1 : vector<4x512xf32>, i32 -> vector<4x512xf32>
    %c32_i32_15 = arith.constant 32 : i32
    %52 = vector.broadcast %c32_i32_15 : i32 to vector<1x512xi32>
    %53 = arith.cmpi sge, %7, %52 : vector<1x512xi32>
    %cst_16 = arith.constant 0.000000e+00 : f32
    %54 = vector.shape_cast %53 : vector<1x512xi1> to vector<1x512xi1>
    %55 = vector.broadcast %54 : vector<1x512xi1> to vector<4x512xi1>
    %56 = vector.broadcast %cst_16 : f32 to vector<4x512xf32>
    %57 = arith.select %55, %51, %56 : vector<4x512xi1>, vector<4x512xf32>
    %58 = arith.addf %50, %57 : vector<4x512xf32>
    %c64_i32 = arith.constant 64 : i32
    %59 = tpu.dynamic_rotate %58 by %c64_i32 dim 1 : vector<4x512xf32>, i32 -> vector<4x512xf32>
    %c64_i32_17 = arith.constant 64 : i32
    %60 = vector.broadcast %c64_i32_17 : i32 to vector<1x512xi32>
    %61 = arith.cmpi sge, %7, %60 : vector<1x512xi32>
    %cst_18 = arith.constant 0.000000e+00 : f32
    %62 = vector.shape_cast %61 : vector<1x512xi1> to vector<1x512xi1>
    %63 = vector.broadcast %62 : vector<1x512xi1> to vector<4x512xi1>
    %64 = vector.broadcast %cst_18 : f32 to vector<4x512xf32>
    %65 = arith.select %63, %59, %64 : vector<4x512xi1>, vector<4x512xf32>
    %66 = arith.addf %58, %65 : vector<4x512xf32>
    %c128_i32 = arith.constant 128 : i32
    %67 = tpu.dynamic_rotate %66 by %c128_i32 dim 1 : vector<4x512xf32>, i32 -> vector<4x512xf32>
    %c128_i32_19 = arith.constant 128 : i32
    %68 = vector.broadcast %c128_i32_19 : i32 to vector<1x512xi32>
    %69 = arith.cmpi sge, %7, %68 : vector<1x512xi32>
    %cst_20 = arith.constant 0.000000e+00 : f32
    %70 = vector.shape_cast %69 : vector<1x512xi1> to vector<1x512xi1>
    %71 = vector.broadcast %70 : vector<1x512xi1> to vector<4x512xi1>
    %72 = vector.broadcast %cst_20 : f32 to vector<4x512xf32>
    %73 = arith.select %71, %67, %72 : vector<4x512xi1>, vector<4x512xf32>
    %74 = arith.addf %66, %73 : vector<4x512xf32>
    %c256_i32 = arith.constant 256 : i32
    %75 = tpu.dynamic_rotate %74 by %c256_i32 dim 1 : vector<4x512xf32>, i32 -> vector<4x512xf32>
    %c256_i32_21 = arith.constant 256 : i32
    %76 = vector.broadcast %c256_i32_21 : i32 to vector<1x512xi32>
    %77 = arith.cmpi sge, %7, %76 : vector<1x512xi32>
    %cst_22 = arith.constant 0.000000e+00 : f32
    %78 = vector.shape_cast %77 : vector<1x512xi1> to vector<1x512xi1>
    %79 = vector.broadcast %78 : vector<1x512xi1> to vector<4x512xi1>
    %80 = vector.broadcast %cst_22 : f32 to vector<4x512xf32>
    %81 = arith.select %79, %75, %80 : vector<4x512xi1>, vector<4x512xf32>
    %82 = arith.addf %74, %81 : vector<4x512xf32>
    %c0_23 = arith.constant 0 : index
    %c0_24 = arith.constant 0 : index
    %83 = vector.load %arg6[%c0_23, %c0_24] : memref<4x1xf32, #tpu.memory_space<vmem>>, vector<4x1xf32>
    %84 = vector.broadcast %83 : vector<4x1xf32> to vector<4x512xf32>
    %85 = arith.addf %82, %84 : vector<4x512xf32>
    %c1_i32_25 = arith.constant 1 : i32
    %86 = vector.broadcast %c1_i32_25 : i32 to vector<1x512xi32>
    %87 = arith.addi %10, %86 : vector<1x512xi32>
    %88 = arith.sitofp %87 : vector<1x512xi32> to vector<1x512xf32>
    %89 = vector.broadcast %6 : vector<4x1xf32> to vector<4x512xf32>
    %90 = arith.subf %89, %85 : vector<4x512xf32>
    %91 = vector.broadcast %88 : vector<1x512xf32> to vector<4x512xf32>
    %92 = arith.subf %91, %85 : vector<4x512xf32>
    %93 = vector.broadcast %6 : vector<4x1xf32> to vector<4x512xf32>
    %94 = arith.addf %93, %92 : vector<4x512xf32>
    %95 = arith.divf %90, %94 : vector<4x512xf32>
    %cst_26 = arith.constant 1.000000e+00 : f32
    %96 = vector.broadcast %cst_26 : f32 to vector<4x512xf32>
    %97 = arith.subf %96, %95 : vector<4x512xf32>
    %c1_i32_27 = arith.constant 1 : i32
    %98 = tpu.dynamic_rotate %97 by %c1_i32_27 dim 1 : vector<4x512xf32>, i32 -> vector<4x512xf32>
    %c0_i32_28 = arith.constant 0 : i32
    %99 = vector.broadcast %c0_i32_28 : i32 to vector<1x512xi32>
    %100 = arith.cmpi eq, %7, %99 : vector<1x512xi32>
    %c0_29 = arith.constant 0 : index
    %c0_30 = arith.constant 0 : index
    %101 = vector.load %arg7[%c0_29, %c0_30] : memref<4x1xf32, #tpu.memory_space<vmem>>, vector<4x1xf32>
    %102 = vector.shape_cast %100 : vector<1x512xi1> to vector<1x512xi1>
    %103 = vector.broadcast %102 : vector<1x512xi1> to vector<4x512xi1>
    %104 = vector.shape_cast %101 : vector<4x1xf32> to vector<4x1xf32>
    %105 = vector.broadcast %104 : vector<4x1xf32> to vector<4x512xf32>
    %106 = arith.select %103, %105, %98 : vector<4x512xi1>, vector<4x512xf32>
    %107 = arith.subf %97, %106 : vector<4x512xf32>
    %c0_31 = arith.constant 0 : index
    %c0_32 = arith.constant 0 : index
    %108 = vector.load %arg8[%c0_31, %c0_32] : memref<4x1xf32, #tpu.memory_space<vmem>>, vector<4x1xf32>
    %109 = arith.mulf %3, %107 : vector<4x512xf32>
    %cst_33 = arith.constant dense<0.000000e+00> : vector<4xf32>
    %110 = vector.multi_reduction <add>, %109, %cst_33 [1] : vector<4x512xf32> to vector<4xf32>
    %111 = vector.shape_cast %110 : vector<4xf32> to vector<4x1xf32>
    %112 = arith.addf %108, %111 : vector<4x1xf32>
    %c0_34 = arith.constant 0 : index
    %c0_35 = arith.constant 0 : index
    %113 = vector.load %arg8[%c0_34, %c0_35] : memref<4x1xf32, #tpu.memory_space<vmem>>, vector<4x1xf32>
    tpu.vector_store %arg8[%c0_34, %c0_35], %112 {strides = array<i32>} : memref<4x1xf32, #tpu.memory_space<vmem>>, vector<4x1xf32>,
    %c0_36 = arith.constant 0 : index
    %c0_37 = arith.constant 0 : index
    %114 = vector.load %arg6[%c0_36, %c0_37] : memref<4x1xf32, #tpu.memory_space<vmem>>, vector<4x1xf32>
    %cst_38 = arith.constant dense<0.000000e+00> : vector<4xf32>
    %115 = vector.multi_reduction <add>, %5, %cst_38 [1] : vector<4x512xf32> to vector<4xf32>
    %116 = vector.shape_cast %115 : vector<4xf32> to vector<4x1xf32>
    %117 = arith.addf %114, %116 : vector<4x1xf32>
    %c0_39 = arith.constant 0 : index
    %c0_40 = arith.constant 0 : index
    %118 = vector.load %arg6[%c0_39, %c0_40] : memref<4x1xf32, #tpu.memory_space<vmem>>, vector<4x1xf32>
    tpu.vector_store %arg6[%c0_39, %c0_40], %117 {strides = array<i32>} : memref<4x1xf32, #tpu.memory_space<vmem>>, vector<4x1xf32>,
    %119 = vector.extract_strided_slice %97 {offsets = [0, 511], sizes = [4, 1], strides = [1, 1]} : vector<4x512xf32> to vector<4x1xf32>
    %c0_41 = arith.constant 0 : index
    %c0_42 = arith.constant 0 : index
    %120 = vector.load %arg7[%c0_41, %c0_42] : memref<4x1xf32, #tpu.memory_space<vmem>>, vector<4x1xf32>
    tpu.vector_store %arg7[%c0_41, %c0_42], %119 {strides = array<i32>} : memref<4x1xf32, #tpu.memory_space<vmem>>, vector<4x1xf32>,
    %c0_i32_43 = arith.constant 0 : i32
    %121 = arith.cmpi eq, %arg1, %c0_i32_43 : i32
    %122 = arith.extui %121 : i1 to i32
    %c0_i32_44 = arith.constant 0 : i32
    %123 = arith.cmpi ne, %122, %c0_i32_44 : i32
    scf.if %123 {
      %c0_45 = arith.constant 0 : index
      %c0_46 = arith.constant 0 : index
      %124 = vector.load %arg8[%c0_45, %c0_46] : memref<4x1xf32, #tpu.memory_space<vmem>>, vector<4x1xf32>
      %c0_47 = arith.constant 0 : index
      %c0_48 = arith.constant 0 : index
      %125 = vector.load %arg5[%c0_47, %c0_48] : memref<4x1xf32, #tpu.memory_space<vmem>>, vector<4x1xf32>
      tpu.vector_store %arg5[%c0_47, %c0_48], %124 {strides = array<i32>} : memref<4x1xf32, #tpu.memory_space<vmem>>, vector<4x1xf32>,
    } else {
    }
    return
  }
  func.func @transform_0(%arg0: i32, %arg1: i32) -> (i32, i32) {
    %c0_i32 = arith.constant 0 : i32
    %c0_i32_0 = arith.constant 0 : i32
    return %arg0, %c0_i32 : i32, i32
  }
  func.func @transform_1(%arg0: i32, %arg1: i32) -> (i32, i32) {
    %c0_i32 = arith.constant 0 : i32
    return %arg0, %arg1 : i32, i32
  }
  func.func @transform_2(%arg0: i32, %arg1: i32) -> (i32, i32) {
    %c0_i32 = arith.constant 0 : i32
    return %arg0, %arg1 : i32, i32
  }
  func.func @transform_3(%arg0: i32, %arg1: i32) -> (i32, i32) {
    %c0_i32 = arith.constant 0 : i32
    %c0_i32_0 = arith.constant 0 : i32
    return %arg0, %c0_i32 : i32, i32
  }
}

</mosaic_0001>

<llo_original>
// kernel: neg.2
$region0: #{neg.2}
  #allocation0 [shape = 's32[1]{0}', space=sflag, size = 0x4, scoped, tag = 'scoped memory for neg.2']
  %s0 = inlined_call_operand.vmem [shape: f32[4,512], index: 0, kind: input, shape index: {}]
  %s1 = inlined_call_operand.vmem [shape: f32[4,512], index: 1, kind: output, shape index: {}]
  %v2 = vld [vmem:[%s0] sm:$0xf]
  %3 = xla_tuple %v2
  %4 = xla_tuple %3
  %v5 = vxor.u32 %v2, 2147483648
  %6 = xla_tuple %v5
  %7 = vst [vmem:[%s1] sm:$0xf] %v5
  %s8 = scalar_lea.vmem %s0, 4
  %v9 = vld [vmem:[%s8] sm:$0xf]
  %10 = xla_tuple %v9
  %11 = xla_tuple %10
  %v12 = vxor.u32 %v9, 2147483648
  %13 = xla_tuple %v12
  %s14 = scalar_lea.vmem %s1, 4
  %15 = vst [vmem:[%s14] sm:$0xf] %v12
  %s16 = scalar_lea.vmem %s0, 8
  %v17 = vld [vmem:[%s16] sm:$0xf]
  %18 = xla_tuple %v17
  %19 = xla_tuple %18
  %v20 = vxor.u32 %v17, 2147483648
  %21 = xla_tuple %v20
  %s22 = scalar_lea.vmem %s1, 8
  %23 = vst [vmem:[%s22] sm:$0xf] %v20
  %s24 = scalar_lea.vmem %s0, 12
  %v25 = vld [vmem:[%s24] sm:$0xf]
  %26 = xla_tuple %v25
  %27 = xla_tuple %26
  %v28 = vxor.u32 %v25, 2147483648
  %29 = xla_tuple %v28
  %s30 = scalar_lea.vmem %s1, 12
  %31 = vst [vmem:[%s30] sm:$0xf] %v28

// kernel: lovasz_softmax_loss.2
$region0: #{lovasz_softmax_loss.2}
  #allocation0 [shape = 'u32[]', space=smem, size = 0x4, offset = 0x4, fixed_abs, tag = 'smem constant byte address 0x4 - core index']
  #allocation1 [shape = 'u32[144,128]{1,0:T(1,128)}', space=vmem, size = 0x12000, scoped, tag = 'internal scratch']
  %s0 = inlined_call_operand.vmem [shape: f32[2,4,256], index: 0, kind: input, shape index: {}]
  %s1 = inlined_call_operand.vmem [shape: s32[2,1,256], index: 1, kind: input, shape index: {}]
  %s2 = inlined_call_operand.vmem [shape: f32[4,512], index: 2, kind: output, shape index: {0}]
  %s3 = inlined_call_operand.vmem [shape: bf16[4,512], index: 3, kind: output, shape index: {1}]
  %s4 = inlined_call_operand.vmem [shape: f32[4,256], index: 4, kind: output, shape index: {2}]
  %5 = xla_tuple %s2, %s3, %s4
  %s6 = sld [smem:[#allocation0]]
  $region57: #{lovasz_softmax_loss.2} parent=0
    _
  %s8 = ssub.s32 1, %s6
  %s9 = scalar_select 0, %s8, %s6
  loop: start=0, step=1, limit=4
  $region2: #{lovasz_softmax_loss.2} parent=0 // loop_pre_header
    _
  $region3: #{lovasz_softmax_loss.2} parent=0 // loop_header
    %s11 = sphi 0, %s15
    %p12 = scmp.ge.s32.totalorder %s11, 4
    %s18 = sphi 0, %s30
    %s19 = sphi 0, %s26
    %s20 = sphi 0, %s18
    %s21 = sphi 0, %s19
    %s22 = sphi 0, %s20
    %s23 = sphi 0, %s21
    %s35 = sphi 0, %s37
    %s38 = sphi 0, %s35
    %s39 = sphi 0, %s38
    %s55 = sphi 0, %s39
    %s63 = sphi 0, %s65
    %s66 = sphi 0, %s63
    %s67 = sphi 0, %s66
    %s83 = sphi 0, %s67
    %s91 = sphi 0, %s93
    %s94 = sphi 0, %s91
    %s95 = sphi 0, %s94
    %s111 = sphi 0, %s95
    %s119 = sphi 0, %s121
    %s122 = sphi 0, %s119
    %s123 = sphi 0, %s122
    %s139 = sphi 0, %s123
    %s147 = sphi 0, %s149
    %s150 = sphi 0, %s147
    %s151 = sphi 0, %s150
    %s167 = sphi 0, %s151
  $region4: #{lovasz_softmax_loss.2} parent=0 // loop_header_branch
    %14 = sbr.rel (%p12) target = $region8
  $region5: #{lovasz_softmax_loss.2} parent=0 // loop_body
    %s16 = ssub.s32 %s11, 1
    %s17 = ssub.s32 %s11, 2
    %s24 = sadd.s32 1, %s19
    %p25 = scmp.ge.s32.totalorder %s24, 1
    %s26 = scalar_select %p25, 0, %s24
    %s27 = sadd.s32 1, %s18
    %s28 = scalar_select %p25, %s27, %s18
    %p29 = scmp.ge.s32.totalorder %s28, 2
    %s30 = scalar_select %p29, 0, %s28
    %s31 = ssub.s32 %s18, %s30
    %s32 = ssub.s32 %s19, %s26
    %s33 = sor.u32 %s31, %s32
    %p34 = scmp.eq.s32.totalorder %s33, 0
    %s36 = sadd.s32 %s35, 1
    %s37 = scalar_select %p34, %s35, %s36
    %p40 = pneg %p34
    %p41 = scmp.eq.s32.totalorder %s11, 1
    %p42 = por %p40, %p41
    %p43 = scmp.ne.s32.totalorder %s35, %s38
    %p44 = scmp.eq.s32.totalorder %s11, 0
    %p45 = por %p43, %p44
    %p46 = scmp.ne.s32.totalorder %s35, %s38
    %p47 = scmp.eq.s32.totalorder %s16, 1
    %p48 = por %p46, %p47
    %p49 = scmp.ne.s32.totalorder %s38, %s39
    %p50 = scmp.eq.s32.totalorder %s16, 0
    %p51 = por %p49, %p50
    %p52 = scmp.ne.s32.totalorder %s38, %s39
    %p53 = scmp.eq.s32.totalorder %s17, 1
    %p54 = por %p52, %p53
    %p56 = scmp.ne.s32.totalorder %s39, %s55
    %p57 = scmp.eq.s32.totalorder %s17, 0
    %p58 = por %p56, %p57
    %s59 = ssub.s32 %s18, %s30
    %s60 = ssub.s32 %s19, %s26
    %s61 = sor.u32 %s59, %s60
    %p62 = scmp.eq.s32.totalorder %s61, 0
    %s64 = sadd.s32 %s63, 1
    %s65 = scalar_select %p62, %s63, %s64
    %p68 = pneg %p62
    %p69 = scmp.eq.s32.totalorder %s11, 1
    %p70 = por %p68, %p69
    %p71 = scmp.ne.s32.totalorder %s63, %s66
    %p72 = scmp.eq.s32.totalorder %s11, 0
    %p73 = por %p71, %p72
    %p74 = scmp.ne.s32.totalorder %s63, %s66
    %p75 = scmp.eq.s32.totalorder %s16, 1
    %p76 = por %p74, %p75
    %p77 = scmp.ne.s32.totalorder %s66, %s67
    %p78 = scmp.eq.s32.totalorder %s16, 0
    %p79 = por %p77, %p78
    %p80 = scmp.ne.s32.totalorder %s66, %s67
    %p81 = scmp.eq.s32.totalorder %s17, 1
    %p82 = por %p80, %p81
    %p84 = scmp.ne.s32.totalorder %s67, %s83
    %p85 = scmp.eq.s32.totalorder %s17, 0
    %p86 = por %p84, %p85
    %s87 = sadd.s32 %s18, %s19
    %s88 = sadd.s32 %s30, %s26
    %s89 = ssub.s32 %s87, %s88
    %p90 = scmp.eq.s32.totalorder %s89, 0
    %s92 = sadd.s32 %s91, 1
    %s93 = scalar_select %p90, %s91, %s92
    %p96 = pneg %p90
    %p97 = scmp.eq.s32.totalorder %s11, 1
    %p98 = por %p96, %p97
    %p99 = scmp.ne.s32.totalorder %s91, %s94
    %p100 = scmp.eq.s32.totalorder %s11, 0
    %p101 = por %p99, %p100
    %p102 = scmp.ne.s32.totalorder %s91, %s94
    %p103 = scmp.eq.s32.totalorder %s16, 1
    %p104 = por %p102, %p103
    %p105 = scmp.ne.s32.totalorder %s94, %s95
    %p106 = scmp.eq.s32.totalorder %s16, 0
    %p107 = por %p105, %p106
    %p108 = scmp.ne.s32.totalorder %s94, %s95
    %p109 = scmp.eq.s32.totalorder %s17, 1
    %p110 = por %p108, %p109
    %p112 = scmp.ne.s32.totalorder %s95, %s111
    %p113 = scmp.eq.s32.totalorder %s17, 0
    %p114 = por %p112, %p113
    %s115 = sadd.s32 %s18, %s19
    %s116 = sadd.s32 %s30, %s26
    %s117 = ssub.s32 %s115, %s116
    %p118 = scmp.eq.s32.totalorder %s117, 0
    %s120 = sadd.s32 %s119, 1
    %s121 = scalar_select %p118, %s119, %s120
    %p124 = pneg %p118
    %p125 = scmp.eq.s32.totalorder %s11, 1
    %p126 = por %p124, %p125
    %p127 = scmp.ne.s32.totalorder %s119, %s122
    %p128 = scmp.eq.s32.totalorder %s11, 0
    %p129 = por %p127, %p128
    %p130 = scmp.ne.s32.totalorder %s119, %s122
    %p131 = scmp.eq.s32.totalorder %s16, 1
    %p132 = por %p130, %p131
    %p133 = scmp.ne.s32.totalorder %s122, %s123
    %p134 = scmp.eq.s32.totalorder %s16, 0
    %p135 = por %p133, %p134
    %p136 = scmp.ne.s32.totalorder %s122, %s123
    %p137 = scmp.eq.s32.totalorder %s17, 1
    %p138 = por %p136, %p137
    %p140 = scmp.ne.s32.totalorder %s123, %s139
    %p141 = scmp.eq.s32.totalorder %s17, 0
    %p142 = por %p140, %p141
    %s143 = sadd.s32 %s18, %s19
    %s144 = sadd.s32 %s30, %s26
    %s145 = ssub.s32 %s143, %s144
    %p146 = scmp.eq.s32.totalorder %s145, 0
    %s148 = sadd.s32 %s147, 1
    %s149 = scalar_select %p146, %s147, %s148
    %p152 = pneg %p146
    %p153 = scmp.eq.s32.totalorder %s11, 1
    %p154 = por %p152, %p153
    %p155 = scmp.ne.s32.totalorder %s147, %s150
    %p156 = scmp.eq.s32.totalorder %s11, 0
    %p157 = por %p155, %p156
    %p158 = scmp.ne.s32.totalorder %s147, %s150
    %p159 = scmp.eq.s32.totalorder %s16, 1
    %p160 = por %p158, %p159
    %p161 = scmp.ne.s32.totalorder %s150, %s151
    %p162 = scmp.eq.s32.totalorder %s16, 0
    %p163 = por %p161, %p162
    %p164 = scmp.ne.s32.totalorder %s150, %s151
    %p165 = scmp.eq.s32.totalorder %s17, 1
    %p166 = por %p164, %p165
    %p168 = scmp.ne.s32.totalorder %s151, %s167
    %p169 = scmp.eq.s32.totalorder %s17, 0
    %p170 = por %p168, %p169
    %p171 = scmp.le.s32.totalorder 1, %s11
    %p172 = scmp.lt.s32.totalorder %s11, 3
    %p173 = pnand %p171, %p172
    %p174 = pneg %p173
    // Predicated region
    $region9: #{lovasz_softmax_loss.2} parent=5 // pred_check
      _
    $region10: #{lovasz_softmax_loss.2} parent=5 // pred_check_branch
      %176 = sbr.rel (%p173) target = $region12
    $region11: #{lovasz_softmax_loss.2} parent=5 // pred_region
      %s177 = ssub.s32 %s11, 1
    $region12: #{lovasz_softmax_loss.2} parent=5 // pred_fallthru
      _
    %p178 = scmp.lt.s32.totalorder %s11, 2
    // Predicated region
    $region13: #{lovasz_softmax_loss.2} parent=5 // pred_check
      %p179 = pneg %p178
    $region14: #{lovasz_softmax_loss.2} parent=5 // pred_check_branch
      %181 = sbr.rel (%p179) target = $region16
    $region15: #{lovasz_softmax_loss.2} parent=5 // pred_region
      // Predicated region
      $region17: #{lovasz_softmax_loss.2} parent=15 // pred_check
        %p182 = pneg %p45
      $region18: #{lovasz_softmax_loss.2} parent=15 // pred_check_branch
        %184 = sbr.rel (%p182) target = $region20
      $region19: #{lovasz_softmax_loss.2} parent=15 // pred_region
        %s185 = smul.u32 2, %s19
        %p186 = scmp.lt.s32.totalorder %s18, 1
        %s187 = scalar_select %p186, %s18, 1
        %p188 = scmp.lt.s32.totalorder %s185, 1
        %s189 = scalar_select %p188, %s185, 1
        %s190 = smul.addr %s187, 2
        %s191 = sadd.s32 %s189, %s190
        %s192 = smul.addr %s191, 4
        %s193 = scalar_lea.vmem %s0, %s192
        %s194 = smul.u32 2, %s19
      $region20: #{lovasz_softmax_loss.2} parent=15 // pred_fallthru
        _
      // Predicated region
      $region21: #{lovasz_softmax_loss.2} parent=15 // pred_check
        %p195 = pneg %p73
      $region22: #{lovasz_softmax_loss.2} parent=15 // pred_check_branch
        %197 = sbr.rel (%p195) target = $region24
      $region23: #{lovasz_softmax_loss.2} parent=15 // pred_region
        %s198 = smul.u32 2, %s19
        %p199 = scmp.lt.s32.totalorder %s18, 1
        %s200 = scalar_select %p199, %s18, 1
        %p201 = scmp.lt.s32.totalorder %s198, 1
        %s202 = scalar_select %p201, %s198, 1
        %s203 = smul.addr %s200, 2
        %s204 = sadd.s32 %s202, %s203
        %s205 = scalar_lea.vmem %s1, %s204
        %s206 = smul.u32 2, %s19
      $region24: #{lovasz_softmax_loss.2} parent=15 // pred_fallthru
        _
    $region16: #{lovasz_softmax_loss.2} parent=5 // pred_fallthru
      _
    %p207 = scmp.le.s32.totalorder 1, %s11
    %p208 = scmp.lt.s32.totalorder %s11, 3
    %p209 = pnand %p207, %p208
    %p210 = pneg %p209
    // Predicated region
    $region25: #{lovasz_softmax_loss.2} parent=5 // pred_check
      _
    $region26: #{lovasz_softmax_loss.2} parent=5 // pred_check_branch
      %212 = sbr.rel (%p209) target = $region28
    $region27: #{lovasz_softmax_loss.2} parent=5 // pred_region
      %s213 = ssub.s32 %s11, 1
      %s214 = smul.u32 2, %s21
      %p215 = scmp.lt.s32.totalorder %s20, 1
      %s216 = scalar_select %p215, %s20, 1
      %p217 = scmp.lt.s32.totalorder %s214, 1
      %s218 = scalar_select %p217, %s214, 1
      %s219 = smul.addr %s216, 2
      %s220 = sadd.s32 %s218, %s219
      %s221 = smul.addr %s220, 4
      %s222 = scalar_lea.vmem %s0, %s221
      %p223 = pneg %p51
      %p224 = pneg %p48
      %s225 = smul.u32 2, %s21
      %p226 = scmp.lt.s32.totalorder %s20, 1
      %s227 = scalar_select %p226, %s20, 1
      %p228 = scmp.lt.s32.totalorder %s225, 1
      %s229 = scalar_select %p228, %s225, 1
      %s230 = smul.addr %s227, 2
      %s231 = sadd.s32 %s229, %s230
      %s232 = scalar_lea.vmem %s1, %s231
      %p233 = pneg %p79
      %p234 = pneg %p76
      %p235 = pneg %p107
      %p236 = pneg %p104
      %s237 = sadd.s32 %s20, %s21
      %s238 = smul.u32 2, %s237
      %p239 = scmp.lt.s32.totalorder %s238, 3
      %s240 = scalar_select %p239, %s238, 3
      %s241 = smul.addr %s240, 4
      %s242 = scalar_lea.vmem %s2, %s241
      %p243 = pneg %p135
      %p244 = pneg %p132
      %s245 = sadd.s32 %s20, %s21
      %s246 = smul.u32 2, %s245
      %p247 = scmp.lt.s32.totalorder %s246, 3
      %s248 = scalar_select %p247, %s246, 3
      %s249 = smul.addr %s248, 2
      %s250 = scalar_lea.vmem %s3, %s249
      %p251 = pneg %p163
      %p252 = pneg %p160
      %s253 = sadd.s32 %s20, %s21
      %p254 = scmp.lt.s32.totalorder %s253, 1
      %s255 = scalar_select %p254, %s253, 1
      %s256 = smul.addr %s255, 4
      %s257 = scalar_lea.vmem %s4, %s256
      %s258 = smul.u32 2, %s21
      %p259 = scmp.lt.s32.totalorder %s20, 1
      %s260 = scalar_select %p259, %s20, 1
      %p261 = scmp.lt.s32.totalorder %s258, 1
      %s262 = scalar_select %p261, %s258, 1
      %s263 = smul.addr %s260, 2
      %s264 = sadd.s32 %s262, %s263
      %s265 = smul.addr %s264, 4
      %s266 = scalar_lea.vmem %s0, %s265
      %s267 = smul.u32 2, %s21
      %s268 = smul.u32 2, %s21
      %p269 = scmp.lt.s32.totalorder %s20, 1
      %s270 = scalar_select %p269, %s20, 1
      %p271 = scmp.lt.s32.totalorder %s268, 1
      %s272 = scalar_select %p271, %s268, 1
      %s273 = smul.addr %s270, 2
      %s274 = sadd.s32 %s272, %s273
      %s275 = scalar_lea.vmem %s1, %s274
      %s276 = smul.u32 2, %s21
      %s277 = sadd.s32 %s20, %s21
      %s278 = smul.u32 2, %s277
      %p279 = scmp.lt.s32.totalorder %s278, 3
      %s280 = scalar_select %p279, %s278, 3
      %s281 = smul.addr %s280, 4
      %s282 = scalar_lea.vmem %s2, %s281
      %s283 = sadd.s32 %s20, %s21
      %s284 = smul.u32 2, %s283
      %s285 = sadd.s32 %s20, %s21
      %s286 = smul.u32 2, %s285
      %p287 = scmp.lt.s32.totalorder %s286, 3
      %s288 = scalar_select %p287, %s286, 3
      %s289 = smul.addr %s288, 2
      %s290 = scalar_lea.vmem %s3, %s289
      %s291 = sadd.s32 %s20, %s21
      %s292 = smul.u32 2, %s291
      %s293 = sadd.s32 %s20, %s21
      %p294 = scmp.lt.s32.totalorder %s293, 1
      %s295 = scalar_select %p294, %s293, 1
      %s296 = smul.addr %s295, 4
      %s297 = scalar_lea.vmem %s4, %s296
      %s298 = sadd.s32 %s20, %s21
      %v299 = vld [vmem:[%s266] sm:$0xff]
      %v300 = vld [vmem:[%s275] sm:$0x3]
      %v302 = vcombine.high %v299, %v299
      %vm304 = vcmask 1043456
      %v305 = vsel %vm304, %v299, -inf
      %v306 = vrot.slane %v305, 4
      %v307 = vmax.f32 %v305, %v306
      %v308 = vrot.slane %v307, 2
      %v309 = vmax.f32 %v307, %v308
      %v310 = vrot.slane %v309, 1
      %v311 = vmax.f32 %v309, %v310
      %v312 = vsel %vm304, %v302, -inf
      %v313 = vrot.slane %v312, 4
      %v314 = vmax.f32 %v312, %v313
      %v315 = vrot.slane %v314, 2
      %v316 = vmax.f32 %v314, %v315
      %v317 = vrot.slane %v316, 1
      %v318 = vmax.f32 %v316, %v317
      %v321 = vcombine.low %v311, %v318
      %v323 = vsub.f32 %v299, %v321
      %v324 = vmul.f32 %v323, 1.442695
      %v325 = vpow.pop %v324
      %v327 = vcombine.high %v325, %v325
      %v329 = vsel %vm304, %v325, 0.0
      %v330 = vrot.slane %v329, 4
      %v331 = vadd.f32 %v329, %v330
      %v332 = vrot.slane %v331, 2
      %v333 = vadd.f32 %v331, %v332
      %v334 = vrot.slane %v333, 1
      %v335 = vadd.f32 %v333, %v334
      %v336 = vsel %vm304, %v327, 0.0
      %v337 = vrot.slane %v336, 4
      %v338 = vadd.f32 %v336, %v337
      %v339 = vrot.slane %v338, 2
      %v340 = vadd.f32 %v338, %v339
      %v341 = vrot.slane %v340, 1
      %v342 = vadd.f32 %v340, %v341
      %v345 = vcombine.low %v335, %v342
      %v347 = vrcp.pop %v345
      %v348 = vmul.f32 %v325, %v347
      %v349 = vlaneseq
      %v350 = vshrl.u32 %v349, 7
      %vm351 = vcmp.ne.s32.totalorder %v300, 255
      %v352 = vlaneseq
      %v353 = vshrl.u32 %v352, 7
      %v354 = vsub.s32 0, %v353
      %v355 = vrot.slane %v300, %v354
      %v356 = vlaneseq
      %v357 = vshrl.u32 %v356, 7
      %v358 = vsub.s32 1, %v357
      %v359 = vrot.slane %v300, %v358
      %vm360 = vcmp.eq.s32.totalorder %v350, %v355
      %vm361 = vcmp.eq.s32.totalorder %v350, %v359
      %v362 = vsel %vm351, 1, 0
      %v363 = vlaneseq
      %v364 = vshrl.u32 %v363, 7
      %v365 = vsub.s32 0, %v364
      %v366 = vrot.slane %v362, %v365
      %v367 = vlaneseq
      %v368 = vshrl.u32 %v367, 7
      %v369 = vsub.s32 1, %v368
      %v370 = vrot.slane %v362, %v369
      %vm371 = vcmp.eq.s32.totalorder %v366, 1
      %vm372 = vcmp.eq.s32.totalorder %v370, 1
      %vm373 = vmand %vm360, %vm371
      %vm374 = vmand %vm361, %vm372
      %v375 = vsel %vm373, 1.0, 0.0
      %v376 = vsel %vm374, 1.0, 0.0
      %v378 = vcombine.high %v348, %v348
      %v380 = vsub.f32 %v375, %v348
      %v381 = vsub.f32 %v376, %v378
      %v382 = vand.u32 2147483647, %v380
      %v383 = vand.u32 2147483647, %v381
      %v384 = vsel %vm371, %v382, 0.0
      %v385 = vsel %vm372, %v383, 0.0
      %v388 = vcombine.low %v384, %v385
      %390 = vst [vmem:[%s282] sm:$0xff] %v388
      %v391 = vpack.c.bf16 %v375, %v375
      %v392 = vpack.c.bf16 %v376, %v376
      %v395 = vcombine.low %v391, %v392
      %v397 = vunpack.c.l.s4 1983009808
      %v398 = vunpack.c.0.s8 %v397
      %v399 = vlaneseq
      %v400 = vshrl.u32 %v399, 7
      %v401 = vsub.s32 %v398, %v400
      %v402 = vrot.slane %v395, %v401
      %404 = vst [vmem:[%s290] sm:$0xf] %v402
      %v405 = vlaneseq
      %v406 = vand.u32 %v405, 127
      %v407 = vsel %vm304, %v375, 0.0
      %v408 = vsel %vm304, %v376, 0.0
      %v409 = vadd.f32 %v407, %v408
      %410 = vadd.xlane.f32.xlu0 %v409
      %v411 = vpop.xlane.xlu0 %410
      %vm412 = vcmp.eq.s32.totalorder %v406, 0
      %v413 = vsel %vm412, 1, 0
      %vm414 = vcmp.eq.s32.totalorder %v413, 1
      %v415 = vsel %vm414, %v411, 0.0
      %416 = vst [vmem:[%s297] sm:$0xf] %v415
      %s417 = sadd.s32 %s20, %s21
      %s418 = smul.u32 2, %s417
      %p419 = scmp.lt.s32.totalorder %s418, 3
      %s420 = scalar_select %p419, %s418, 3
      %s421 = smul.addr %s420, 4
      %s422 = scalar_lea.vmem %s2, %s421
      %s423 = sadd.s32 %s20, %s21
      %s424 = smul.u32 2, %s423
      %p425 = scmp.lt.s32.totalorder %s424, 3
      %s426 = scalar_select %p425, %s424, 3
      %s427 = smul.addr %s426, 2
      %s428 = scalar_lea.vmem %s3, %s427
      %s429 = sadd.s32 %s20, %s21
      %p430 = scmp.lt.s32.totalorder %s429, 1
      %s431 = scalar_select %p430, %s429, 1
      %s432 = smul.addr %s431, 4
      %s433 = scalar_lea.vmem %s4, %s432
      // Predicated region
      $region29: #{lovasz_softmax_loss.2} parent=27 // pred_check
        %p434 = pneg %p104
      $region30: #{lovasz_softmax_loss.2} parent=27 // pred_check_branch
        %436 = sbr.rel (%p434) target = $region32
      $region31: #{lovasz_softmax_loss.2} parent=27 // pred_region
        %s437 = sadd.s32 %s20, %s21
        %s438 = smul.u32 2, %s437
      $region32: #{lovasz_softmax_loss.2} parent=27 // pred_fallthru
        _
      // Predicated region
      $region33: #{lovasz_softmax_loss.2} parent=27 // pred_check
        %p439 = pneg %p132
      $region34: #{lovasz_softmax_loss.2} parent=27 // pred_check_branch
        %441 = sbr.rel (%p439) target = $region36
      $region35: #{lovasz_softmax_loss.2} parent=27 // pred_region
        %s442 = sadd.s32 %s20, %s21
        %s443 = smul.u32 2, %s442
      $region36: #{lovasz_softmax_loss.2} parent=27 // pred_fallthru
        _
      // Predicated region
      $region37: #{lovasz_softmax_loss.2} parent=27 // pred_check
        %p444 = pneg %p160
      $region38: #{lovasz_softmax_loss.2} parent=27 // pred_check_branch
        %446 = sbr.rel (%p444) target = $region40
      $region39: #{lovasz_softmax_loss.2} parent=27 // pred_region
        %s447 = sadd.s32 %s20, %s21
      $region40: #{lovasz_softmax_loss.2} parent=27 // pred_fallthru
        _
    $region28: #{lovasz_softmax_loss.2} parent=5 // pred_fallthru
      _
    %p448 = scmp.le.s32.totalorder 2, %s11
    // Predicated region
    $region41: #{lovasz_softmax_loss.2} parent=5 // pred_check
      %p449 = pneg %p448
    $region42: #{lovasz_softmax_loss.2} parent=5 // pred_check_branch
      %451 = sbr.rel (%p449) target = $region44
    $region43: #{lovasz_softmax_loss.2} parent=5 // pred_region
      %s452 = ssub.s32 %s11, 2
      // Predicated region
      $region45: #{lovasz_softmax_loss.2} parent=43 // pred_check
        %p453 = pneg %p110
      $region46: #{lovasz_softmax_loss.2} parent=43 // pred_check_branch
        %455 = sbr.rel (%p453) target = $region48
      $region47: #{lovasz_softmax_loss.2} parent=43 // pred_region
        %s456 = sadd.s32 %s22, %s23
        %s457 = smul.u32 2, %s456
        %p458 = scmp.lt.s32.totalorder %s457, 3
        %s459 = scalar_select %p458, %s457, 3
        %s460 = smul.addr %s459, 4
        %s461 = scalar_lea.vmem %s2, %s460
      $region48: #{lovasz_softmax_loss.2} parent=43 // pred_fallthru
        _
      // Predicated region
      $region49: #{lovasz_softmax_loss.2} parent=43 // pred_check
        %p462 = pneg %p138
      $region50: #{lovasz_softmax_loss.2} parent=43 // pred_check_branch
        %464 = sbr.rel (%p462) target = $region52
      $region51: #{lovasz_softmax_loss.2} parent=43 // pred_region
        %s465 = sadd.s32 %s22, %s23
        %s466 = smul.u32 2, %s465
        %p467 = scmp.lt.s32.totalorder %s466, 3
        %s468 = scalar_select %p467, %s466, 3
        %s469 = smul.addr %s468, 2
        %s470 = scalar_lea.vmem %s3, %s469
      $region52: #{lovasz_softmax_loss.2} parent=43 // pred_fallthru
        _
      // Predicated region
      $region53: #{lovasz_softmax_loss.2} parent=43 // pred_check
        %p471 = pneg %p166
      $region54: #{lovasz_softmax_loss.2} parent=43 // pred_check_branch
        %473 = sbr.rel (%p471) target = $region56
      $region55: #{lovasz_softmax_loss.2} parent=43 // pred_region
        %s474 = sadd.s32 %s22, %s23
        %p475 = scmp.lt.s32.totalorder %s474, 1
        %s476 = scalar_select %p475, %s474, 1
        %s477 = smul.addr %s476, 4
        %s478 = scalar_lea.vmem %s4, %s477
      $region56: #{lovasz_softmax_loss.2} parent=43 // pred_fallthru
        _
    $region44: #{lovasz_softmax_loss.2} parent=5 // pred_fallthru
      _
  $region6: #{lovasz_softmax_loss.2} parent=0 // loop_footer
    %s15 = sadd.s32 1, %s11
  $region7: #{lovasz_softmax_loss.2} parent=0 // loop_footer_branch
    %10 = sbr.rel target = $region3
  $region8: #{lovasz_softmax_loss.2} parent=0 // loop_exit
    _

// kernel: lovasz_softmax_loss.3
$region0: #{lovasz_softmax_loss.3}
  #allocation0 [shape = 'u32[]', space=smem, size = 0x4, offset = 0x4, fixed_abs, tag = 'smem constant byte address 0x4 - core index']
  #allocation1 [shape = 'u32[144,128]{1,0:T(1,128)}', space=vmem, size = 0x12000, scoped, tag = 'internal scratch']
  #allocation2 [shape = 'f32[4,1]{1,0:T(4,128)}', space=vmem, size = 0x800, scoped, tag = 'scratch operand']
  #allocation3 [shape = 'f32[4,1]{1,0:T(4,128)}', space=vmem, size = 0x800, scoped, tag = 'scratch operand']
  #allocation4 [shape = 'f32[4,1]{1,0:T(4,128)}', space=vmem, size = 0x800, scoped, tag = 'scratch operand']
  %s0 = inlined_call_operand.vmem [shape: f32[4,1], index: 0, kind: input, shape index: {}]
  %s1 = inlined_call_operand.vmem [shape: f32[4,512], index: 1, kind: input, shape index: {}]
  %s2 = inlined_call_operand.vmem [shape: bf16[4,512], index: 2, kind: input, shape index: {}]
  %s3 = inlined_call_operand.vmem [shape: f32[4,1], index: 3, kind: output, shape index: {}]
  %s4 = sld [smem:[#allocation0]]
  $region30: #{lovasz_softmax_loss.3} parent=0
    _
  %s6 = ssub.s32 1, %s4
  %s7 = scalar_select 0, %s6, %s4
  // Predicated region
  $region2: #{lovasz_softmax_loss.3} parent=0 // pred_check
    _
  $region3: #{lovasz_softmax_loss.3} parent=0 // pred_check_branch
    %9 = sbr.rel (0) target = $region5
  $region4: #{lovasz_softmax_loss.3} parent=0 // pred_region
    _
  $region5: #{lovasz_softmax_loss.3} parent=0 // pred_fallthru
    _
  // Predicated region
  $region6: #{lovasz_softmax_loss.3} parent=0 // pred_check
    _
  $region7: #{lovasz_softmax_loss.3} parent=0 // pred_check_branch
    %11 = sbr.rel (0) target = $region9
  $region8: #{lovasz_softmax_loss.3} parent=0 // pred_region
    _
  $region9: #{lovasz_softmax_loss.3} parent=0 // pred_fallthru
    _
  // Predicated region
  $region10: #{lovasz_softmax_loss.3} parent=0 // pred_check
    _
  $region11: #{lovasz_softmax_loss.3} parent=0 // pred_check_branch
    %13 = sbr.rel (0) target = $region13
  $region12: #{lovasz_softmax_loss.3} parent=0 // pred_region
    _
  $region13: #{lovasz_softmax_loss.3} parent=0 // pred_fallthru
    _
  %p14 = scmp.eq.s32.totalorder 0, 0
  // Predicated region
  $region14: #{lovasz_softmax_loss.3} parent=0 // pred_check
    %p15 = pneg %p14
  $region15: #{lovasz_softmax_loss.3} parent=0 // pred_check_branch
    %17 = sbr.rel (%p15) target = $region17
  $region16: #{lovasz_softmax_loss.3} parent=0 // pred_region
    %vm18 = vcmask 3072
    %19 = vst.msk [vmem:[#allocation2] sm:$0xf] %vm18, 0.0
    %20 = vst.msk [vmem:[#allocation3] sm:$0xf] %vm18, 0.0
    %21 = vst.msk [vmem:[#allocation4] sm:$0xf] %vm18, 0.0
  $region17: #{lovasz_softmax_loss.3} parent=0 // pred_fallthru
    _
  %v22 = vld [vmem:[%s1] sm:$0xff]
  %v23 = vld [vmem:[%s1 + $0x8] sm:$0xff]
  %v24 = vld [vmem:[%s2] sm:$0xff]
  %v25 = vunpack.c.l.bf16 %v24
  %v26 = vunpack.c.h.bf16 %v24
  %v27 = vld [vmem:[%s0] sm:$0xf]
  %v28 = vlaneseq
  %v29 = vand.u32 %v28, 127
  %v30 = vadd.s32 %v29, 128
  %v31 = vadd.s32 %v29, 256
  %v32 = vadd.s32 %v29, 384
  %s33 = smul.u32 0, 512
  %v34 = vstv %s33
  %v35 = vadd.s32 %v29, %v34
  %v36 = vadd.s32 %v30, %v34
  %v37 = vadd.s32 %v31, %v34
  %v38 = vadd.s32 %v32, %v34
  %v41 = vcombine.high %v25, %v25
  %v42 = vcombine.high %v26, %v26
  %45 = vrot.lane.b32.xlu0 %v25, 1
  %v46 = vpop.permute.xlu0 %45
  %47 = vrot.lane.b32.xlu0 %v41, 1
  %v48 = vpop.permute.xlu0 %47
  %49 = vrot.lane.b32.xlu0 %v26, 1
  %v50 = vpop.permute.xlu0 %49
  %51 = vrot.lane.b32.xlu0 %v42, 1
  %v52 = vpop.permute.xlu0 %51
  %vm53 = vcmp.lt.s32.totalorder %v29, 1
  %v54 = vsel %vm53, %v50, %v52
  %v55 = vsel %vm53, %v48, %v50
  %v56 = vsel %vm53, %v46, %v48
  %v57 = vsel %vm53, %v52, %v46
  %vm58 = vcmp.ge.s32.totalorder %v29, 1
  %vm59 = vcmp.ge.s32.totalorder %v30, 1
  %vm60 = vcmp.ge.s32.totalorder %v31, 1
  %vm61 = vcmp.ge.s32.totalorder %v32, 1
  %v62 = vsel %vm58, 1, 0
  %v63 = vsel %vm59, 1, 0
  %v64 = vsel %vm60, 1, 0
  %v65 = vsel %vm61, 1, 0
  %vm66 = vcmp.eq.s32.totalorder %v62, 1
  %vm67 = vcmp.eq.s32.totalorder %v63, 1
  %vm68 = vcmp.eq.s32.totalorder %v64, 1
  %vm69 = vcmp.eq.s32.totalorder %v65, 1
  %v70 = vsel %vm66, %v57, 0.0
  %v71 = vsel %vm67, %v56, 0.0
  %v72 = vsel %vm68, %v55, 0.0
  %v73 = vsel %vm69, %v54, 0.0
  %v78 = vcombine.low %v70, %v71
  %v79 = vcombine.low %v72, %v73
  %v82 = vadd.f32 %v25, %v78
  %v83 = vadd.f32 %v26, %v79
  %v86 = vcombine.high %v82, %v82
  %v87 = vcombine.high %v83, %v83
  %90 = vrot.lane.b32.xlu0 %v82, 2
  %v91 = vpop.permute.xlu0 %90
  %92 = vrot.lane.b32.xlu0 %v86, 2
  %v93 = vpop.permute.xlu0 %92
  %94 = vrot.lane.b32.xlu0 %v83, 2
  %v95 = vpop.permute.xlu0 %94
  %96 = vrot.lane.b32.xlu0 %v87, 2
  %v97 = vpop.permute.xlu0 %96
  %vm98 = vcmp.lt.s32.totalorder %v29, 2
  %v99 = vsel %vm98, %v95, %v97
  %v100 = vsel %vm98, %v93, %v95
  %v101 = vsel %vm98, %v91, %v93
  %v102 = vsel %vm98, %v97, %v91
  %vm103 = vcmp.ge.s32.totalorder %v29, 2
  %vm104 = vcmp.ge.s32.totalorder %v30, 2
  %vm105 = vcmp.ge.s32.totalorder %v31, 2
  %vm106 = vcmp.ge.s32.totalorder %v32, 2
  %v107 = vsel %vm103, 1, 0
  %v108 = vsel %vm104, 1, 0
  %v109 = vsel %vm105, 1, 0
  %v110 = vsel %vm106, 1, 0
  %vm111 = vcmp.eq.s32.totalorder %v107, 1
  %vm112 = vcmp.eq.s32.totalorder %v108, 1
  %vm113 = vcmp.eq.s32.totalorder %v109, 1
  %vm114 = vcmp.eq.s32.totalorder %v110, 1
  %v115 = vsel %vm111, %v102, 0.0
  %v116 = vsel %vm112, %v101, 0.0
  %v117 = vsel %vm113, %v100, 0.0
  %v118 = vsel %vm114, %v99, 0.0
  %v123 = vcombine.low %v115, %v116
  %v124 = vcombine.low %v117, %v118
  %v127 = vadd.f32 %v82, %v123
  %v128 = vadd.f32 %v83, %v124
  %v131 = vcombine.high %v127, %v127
  %v132 = vcombine.high %v128, %v128
  %135 = vrot.lane.b32.xlu0 %v127, 4
  %v136 = vpop.permute.xlu0 %135
  %137 = vrot.lane.b32.xlu0 %v131, 4
  %v138 = vpop.permute.xlu0 %137
  %139 = vrot.lane.b32.xlu0 %v128, 4
  %v140 = vpop.permute.xlu0 %139
  %141 = vrot.lane.b32.xlu0 %v132, 4
  %v142 = vpop.permute.xlu0 %141
  %vm143 = vcmp.lt.s32.totalorder %v29, 4
  %v144 = vsel %vm143, %v140, %v142
  %v145 = vsel %vm143, %v138, %v140
  %v146 = vsel %vm143, %v136, %v138
  %v147 = vsel %vm143, %v142, %v136
  %vm148 = vcmp.ge.s32.totalorder %v29, 4
  %vm149 = vcmp.ge.s32.totalorder %v30, 4
  %vm150 = vcmp.ge.s32.totalorder %v31, 4
  %vm151 = vcmp.ge.s32.totalorder %v32, 4
  %v152 = vsel %vm148, 1, 0
  %v153 = vsel %vm149, 1, 0
  %v154 = vsel %vm150, 1, 0
  %v155 = vsel %vm151, 1, 0
  %vm156 = vcmp.eq.s32.totalorder %v152, 1
  %vm157 = vcmp.eq.s32.totalorder %v153, 1
  %vm158 = vcmp.eq.s32.totalorder %v154, 1
  %vm159 = vcmp.eq.s32.totalorder %v155, 1
  %v160 = vsel %vm156, %v147, 0.0
  %v161 = vsel %vm157, %v146, 0.0
  %v162 = vsel %vm158, %v145, 0.0
  %v163 = vsel %vm159, %v144, 0.0
  %v168 = vcombine.low %v160, %v161
  %v169 = vcombine.low %v162, %v163
  %v172 = vadd.f32 %v127, %v168
  %v173 = vadd.f32 %v128, %v169
  %v176 = vcombine.high %v172, %v172
  %v177 = vcombine.high %v173, %v173
  %180 = vrot.lane.b32.xlu0 %v172, 8
  %v181 = vpop.permute.xlu0 %180
  %182 = vrot.lane.b32.xlu0 %v176, 8
  %v183 = vpop.permute.xlu0 %182
  %184 = vrot.lane.b32.xlu0 %v173, 8
  %v185 = vpop.permute.xlu0 %184
  %186 = vrot.lane.b32.xlu0 %v177, 8
  %v187 = vpop.permute.xlu0 %186
  %vm188 = vcmp.lt.s32.totalorder %v29, 8
  %v189 = vsel %vm188, %v185, %v187
  %v190 = vsel %vm188, %v183, %v185
  %v191 = vsel %vm188, %v181, %v183
  %v192 = vsel %vm188, %v187, %v181
  %vm193 = vcmp.ge.s32.totalorder %v29, 8
  %vm194 = vcmp.ge.s32.totalorder %v30, 8
  %vm195 = vcmp.ge.s32.totalorder %v31, 8
  %vm196 = vcmp.ge.s32.totalorder %v32, 8
  %v197 = vsel %vm193, 1, 0
  %v198 = vsel %vm194, 1, 0
  %v199 = vsel %vm195, 1, 0
  %v200 = vsel %vm196, 1, 0
  %vm201 = vcmp.eq.s32.totalorder %v197, 1
  %vm202 = vcmp.eq.s32.totalorder %v198, 1
  %vm203 = vcmp.eq.s32.totalorder %v199, 1
  %vm204 = vcmp.eq.s32.totalorder %v200, 1
  %v205 = vsel %vm201, %v192, 0.0
  %v206 = vsel %vm202, %v191, 0.0
  %v207 = vsel %vm203, %v190, 0.0
  %v208 = vsel %vm204, %v189, 0.0
  %v213 = vcombine.low %v205, %v206
  %v214 = vcombine.low %v207, %v208
  %v217 = vadd.f32 %v172, %v213
  %v218 = vadd.f32 %v173, %v214
  %v221 = vcombine.high %v217, %v217
  %v222 = vcombine.high %v218, %v218
  %225 = vrot.lane.b32.xlu0 %v217, 16
  %v226 = vpop.permute.xlu0 %225
  %227 = vrot.lane.b32.xlu0 %v221, 16
  %v228 = vpop.permute.xlu0 %227
  %229 = vrot.lane.b32.xlu0 %v218, 16
  %v230 = vpop.permute.xlu0 %229
  %231 = vrot.lane.b32.xlu0 %v222, 16
  %v232 = vpop.permute.xlu0 %231
  %vm233 = vcmp.lt.s32.totalorder %v29, 16
  %v234 = vsel %vm233, %v230, %v232
  %v235 = vsel %vm233, %v228, %v230
  %v236 = vsel %vm233, %v226, %v228
  %v237 = vsel %vm233, %v232, %v226
  %vm238 = vcmp.ge.s32.totalorder %v29, 16
  %vm239 = vcmp.ge.s32.totalorder %v30, 16
  %vm240 = vcmp.ge.s32.totalorder %v31, 16
  %vm241 = vcmp.ge.s32.totalorder %v32, 16
  %v242 = vsel %vm238, 1, 0
  %v243 = vsel %vm239, 1, 0
  %v244 = vsel %vm240, 1, 0
  %v245 = vsel %vm241, 1, 0
  %vm246 = vcmp.eq.s32.totalorder %v242, 1
  %vm247 = vcmp.eq.s32.totalorder %v243, 1
  %vm248 = vcmp.eq.s32.totalorder %v244, 1
  %vm249 = vcmp.eq.s32.totalorder %v245, 1
  %v250 = vsel %vm246, %v237, 0.0
  %v251 = vsel %vm247, %v236, 0.0
  %v252 = vsel %vm248, %v235, 0.0
  %v253 = vsel %vm249, %v234, 0.0
  %v258 = vcombine.low %v250, %v251
  %v259 = vcombine.low %v252, %v253
  %v262 = vadd.f32 %v217, %v258
  %v263 = vadd.f32 %v218, %v259
  %v266 = vcombine.high %v262, %v262
  %v267 = vcombine.high %v263, %v263
  %270 = vrot.lane.b32.xlu0 %v262, 32
  %v271 = vpop.permute.xlu0 %270
  %272 = vrot.lane.b32.xlu0 %v266, 32
  %v273 = vpop.permute.xlu0 %272
  %274 = vrot.lane.b32.xlu0 %v263, 32
  %v275 = vpop.permute.xlu0 %274
  %276 = vrot.lane.b32.xlu0 %v267, 32
  %v277 = vpop.permute.xlu0 %276
  %vm278 = vcmp.lt.s32.totalorder %v29, 32
  %v279 = vsel %vm278, %v275, %v277
  %v280 = vsel %vm278, %v273, %v275
  %v281 = vsel %vm278, %v271, %v273
  %v282 = vsel %vm278, %v277, %v271
  %vm283 = vcmp.ge.s32.totalorder %v29, 32
  %vm284 = vcmp.ge.s32.totalorder %v30, 32
  %vm285 = vcmp.ge.s32.totalorder %v31, 32
  %vm286 = vcmp.ge.s32.totalorder %v32, 32
  %v287 = vsel %vm283, 1, 0
  %v288 = vsel %vm284, 1, 0
  %v289 = vsel %vm285, 1, 0
  %v290 = vsel %vm286, 1, 0
  %vm291 = vcmp.eq.s32.totalorder %v287, 1
  %vm292 = vcmp.eq.s32.totalorder %v288, 1
  %vm293 = vcmp.eq.s32.totalorder %v289, 1
  %vm294 = vcmp.eq.s32.totalorder %v290, 1
  %v295 = vsel %vm291, %v282, 0.0
  %v296 = vsel %vm292, %v281, 0.0
  %v297 = vsel %vm293, %v280, 0.0
  %v298 = vsel %vm294, %v279, 0.0
  %v303 = vcombine.low %v295, %v296
  %v304 = vcombine.low %v297, %v298
  %v307 = vadd.f32 %v262, %v303
  %v308 = vadd.f32 %v263, %v304
  %v311 = vcombine.high %v307, %v307
  %v312 = vcombine.high %v308, %v308
  %315 = vrot.lane.b32.xlu0 %v307, 64
  %v316 = vpop.permute.xlu0 %315
  %317 = vrot.lane.b32.xlu0 %v311, 64
  %v318 = vpop.permute.xlu0 %317
  %319 = vrot.lane.b32.xlu0 %v308, 64
  %v320 = vpop.permute.xlu0 %319
  %321 = vrot.lane.b32.xlu0 %v312, 64
  %v322 = vpop.permute.xlu0 %321
  %vm323 = vcmp.lt.s32.totalorder %v29, 64
  %v324 = vsel %vm323, %v320, %v322
  %v325 = vsel %vm323, %v318, %v320
  %v326 = vsel %vm323, %v316, %v318
  %v327 = vsel %vm323, %v322, %v316
  %vm328 = vcmp.ge.s32.totalorder %v29, 64
  %vm329 = vcmp.ge.s32.totalorder %v30, 64
  %vm330 = vcmp.ge.s32.totalorder %v31, 64
  %vm331 = vcmp.ge.s32.totalorder %v32, 64
  %v332 = vsel %vm328, 1, 0
  %v333 = vsel %vm329, 1, 0
  %v334 = vsel %vm330, 1, 0
  %v335 = vsel %vm331, 1, 0
  %vm336 = vcmp.eq.s32.totalorder %v332, 1
  %vm337 = vcmp.eq.s32.totalorder %v333, 1
  %vm338 = vcmp.eq.s32.totalorder %v334, 1
  %vm339 = vcmp.eq.s32.totalorder %v335, 1
  %v340 = vsel %vm336, %v327, 0.0
  %v341 = vsel %vm337, %v326, 0.0
  %v342 = vsel %vm338, %v325, 0.0
  %v343 = vsel %vm339, %v324, 0.0
  %v348 = vcombine.low %v340, %v341
  %v349 = vcombine.low %v342, %v343
  %v352 = vadd.f32 %v307, %v348
  %v353 = vadd.f32 %v308, %v349
  %v356 = vcombine.high %v352, %v352
  %v357 = vcombine.high %v353, %v353
  %vm360 = vcmp.ge.s32.totalorder %v29, 128
  %vm361 = vcmp.ge.s32.totalorder %v30, 128
  %vm362 = vcmp.ge.s32.totalorder %v31, 128
  %vm363 = vcmp.ge.s32.totalorder %v32, 128
  %v364 = vsel %vm360, 1, 0
  %v365 = vsel %vm361, 1, 0
  %v366 = vsel %vm362, 1, 0
  %v367 = vsel %vm363, 1, 0
  %vm368 = vcmp.eq.s32.totalorder %v364, 1
  %vm369 = vcmp.eq.s32.totalorder %v365, 1
  %vm370 = vcmp.eq.s32.totalorder %v366, 1
  %vm371 = vcmp.eq.s32.totalorder %v367, 1
  %v372 = vsel %vm368, %v357, 0.0
  %v373 = vsel %vm369, %v352, 0.0
  %v374 = vsel %vm370, %v356, 0.0
  %v375 = vsel %vm371, %v353, 0.0
  %v380 = vcombine.low %v372, %v373
  %v381 = vcombine.low %v374, %v375
  %v384 = vadd.f32 %v352, %v380
  %v385 = vadd.f32 %v353, %v381
  %v388 = vcombine.high %v384, %v384
  %v389 = vcombine.high %v385, %v385
  %vm392 = vcmp.ge.s32.totalorder %v29, 256
  %vm393 = vcmp.ge.s32.totalorder %v30, 256
  %vm394 = vcmp.ge.s32.totalorder %v31, 256
  %vm395 = vcmp.ge.s32.totalorder %v32, 256
  %v396 = vsel %vm392, 1, 0
  %v397 = vsel %vm393, 1, 0
  %v398 = vsel %vm394, 1, 0
  %v399 = vsel %vm395, 1, 0
  %vm400 = vcmp.eq.s32.totalorder %v396, 1
  %vm401 = vcmp.eq.s32.totalorder %v397, 1
  %vm402 = vcmp.eq.s32.totalorder %v398, 1
  %vm403 = vcmp.eq.s32.totalorder %v399, 1
  %v404 = vsel %vm400, %v385, 0.0
  %v405 = vsel %vm401, %v389, 0.0
  %v406 = vsel %vm402, %v384, 0.0
  %v407 = vsel %vm403, %v388, 0.0
  %v412 = vcombine.low %v404, %v405
  %v413 = vcombine.low %v406, %v407
  %v416 = vadd.f32 %v384, %v412
  %v417 = vadd.f32 %v385, %v413
  %v418 = vld [vmem:[#allocation2] sm:$0xf]
  %420 = vset.pattern.permute.xlu0 0
  %421 = vperm.xlu0 %420, %v418
  %v422 = vpop.permute.xlu0 %421
  %v424 = vunpack.c.l.s4 839922192
  %v425 = vunpack.c.0.s8 %v424
  %v426 = vlaneseq
  %v427 = vshrl.u32 %v426, 7
  %v428 = vsub.s32 %v425, %v427
  %v429 = vrot.slane %v422, %v428
  %v431 = vadd.f32 %v416, %v429
  %v432 = vadd.f32 %v417, %v429
  %v433 = vadd.s32 %v35, 1
  %v434 = vadd.s32 %v36, 1
  %v435 = vadd.s32 %v37, 1
  %v436 = vadd.s32 %v38, 1
  %v437 = vcvt.s32.f32 %v433
  %v438 = vcvt.s32.f32 %v434
  %v439 = vcvt.s32.f32 %v435
  %v440 = vcvt.s32.f32 %v436
  %442 = vset.pattern.permute.xlu0 0
  %443 = vperm.xlu0 %442, %v27
  %v444 = vpop.permute.xlu0 %443
  %v448 = vcombine.high %v431, %v431
  %v449 = vcombine.high %v432, %v432
  %v452 = vsub.f32 %v444, %v431
  %v453 = vsub.f32 %v444, %v448
  %v454 = vsub.f32 %v444, %v432
  %v455 = vsub.f32 %v444, %v449
  %v456 = vsub.f32 %v437, %v431
  %v457 = vsub.f32 %v438, %v448
  %v458 = vsub.f32 %v439, %v432
  %v459 = vsub.f32 %v440, %v449
  %v460 = vadd.f32 %v444, %v456
  %v461 = vadd.f32 %v444, %v457
  %v462 = vadd.f32 %v444, %v458
  %v463 = vadd.f32 %v444, %v459
  %v464 = vrcp.pop %v460
  %v465 = vmul.f32 %v452, %v464
  %v466 = vrcp.pop %v461
  %v467 = vmul.f32 %v453, %v466
  %v468 = vrcp.pop %v462
  %v469 = vmul.f32 %v454, %v468
  %v470 = vrcp.pop %v463
  %v471 = vmul.f32 %v455, %v470
  %v472 = vsub.f32 1.0, %v465
  %v473 = vsub.f32 1.0, %v467
  %v474 = vsub.f32 1.0, %v469
  %v475 = vsub.f32 1.0, %v471
  %476 = vrot.lane.b32.xlu0 %v472, 1
  %v477 = vpop.permute.xlu0 %476
  %478 = vrot.lane.b32.xlu0 %v473, 1
  %v479 = vpop.permute.xlu0 %478
  %480 = vrot.lane.b32.xlu0 %v474, 1
  %v481 = vpop.permute.xlu0 %480
  %482 = vrot.lane.b32.xlu0 %v475, 1
  %v483 = vpop.permute.xlu0 %482
  %v484 = vsel %vm53, %v481, %v483
  %v485 = vsel %vm53, %v479, %v481
  %v486 = vsel %vm53, %v477, %v479
  %v487 = vsel %vm53, %v483, %v477
  %vm488 = vcmp.eq.s32.totalorder %v29, 0
  %vm489 = vcmp.eq.s32.totalorder %v30, 0
  %vm490 = vcmp.eq.s32.totalorder %v31, 0
  %vm491 = vcmp.eq.s32.totalorder %v32, 0
  %v492 = vld [vmem:[#allocation3] sm:$0xf]
  %v493 = vsel %vm488, 1, 0
  %v494 = vsel %vm489, 1, 0
  %v495 = vsel %vm490, 1, 0
  %v496 = vsel %vm491, 1, 0
  %vm497 = vcmp.eq.s32.totalorder %v493, 1
  %vm498 = vcmp.eq.s32.totalorder %v494, 1
  %vm499 = vcmp.eq.s32.totalorder %v495, 1
  %vm500 = vcmp.eq.s32.totalorder %v496, 1
  %502 = vset.pattern.permute.xlu0 0
  %503 = vperm.xlu0 %502, %v492
  %v504 = vpop.permute.xlu0 %503
  %v506 = vsel %vm497, %v504, %v487
  %v507 = vsel %vm498, %v504, %v486
  %v508 = vsel %vm499, %v504, %v485
  %v509 = vsel %vm500, %v504, %v484
  %v510 = vsub.f32 %v472, %v506
  %v511 = vsub.f32 %v473, %v507
  %v512 = vsub.f32 %v474, %v508
  %v513 = vsub.f32 %v475, %v509
  %v514 = vld [vmem:[#allocation4] sm:$0xf]
  %v519 = vcombine.low %v510, %v511
  %v520 = vcombine.low %v512, %v513
  %v523 = vmul.f32 %v22, %v519
  %v524 = vmul.f32 %v23, %v520
  %v527 = vcombine.high %v523, %v523
  %v528 = vcombine.high %v524, %v524
  %vm531 = vcmask 1043456
  %v532 = vsel %vm531, %v523, 0.0
  %v533 = vsel %vm531, %v527, 0.0
  %v534 = vadd.f32 %v532, %v533
  %v535 = vsel %vm531, %v524, 0.0
  %v536 = vadd.f32 %v534, %v535
  %v537 = vsel %vm531, %v528, 0.0
  %v538 = vadd.f32 %v536, %v537
  %539 = vadd.xlane.f32.xlu0 %v538
  %v540 = vpop.xlane.xlu0 %539
  %v541 = vadd.f32 %v514, %v540
  %vm542 = vcmask 3072
  %543 = vst.msk [vmem:[#allocation4] sm:$0xf] %vm542, %v541
  %v544 = vld [vmem:[#allocation2] sm:$0xf]
  %v545 = vsel %vm531, %v25, 0.0
  %v546 = vsel %vm531, %v41, 0.0
  %v547 = vadd.f32 %v545, %v546
  %v548 = vsel %vm531, %v26, 0.0
  %v549 = vadd.f32 %v547, %v548
  %v550 = vsel %vm531, %v42, 0.0
  %v551 = vadd.f32 %v549, %v550
  %552 = vadd.xlane.f32.xlu0 %v551
  %v553 = vpop.xlane.xlu0 %552
  %v554 = vadd.f32 %v544, %v553
  %555 = vst.msk [vmem:[#allocation2] sm:$0xf] %vm542, %v554
  %557 = vrot.lane.b32.xlu0 %v475, 1
  %v558 = vpop.permute.xlu0 %557
  %560 = vst.msk [vmem:[#allocation3] sm:$0xf] %vm542, %v558
  // Predicated region
  $region18: #{lovasz_softmax_loss.3} parent=0 // pred_check
    %p561 = pneg %p14
  $region19: #{lovasz_softmax_loss.3} parent=0 // pred_check_branch
    %563 = sbr.rel (%p561) target = $region21
  $region20: #{lovasz_softmax_loss.3} parent=0 // pred_region
    %v564 = vld [vmem:[#allocation4] sm:$0xf]
    %565 = vst.msk [vmem:[%s3] sm:$0xf] %vm542, %v564
  $region21: #{lovasz_softmax_loss.3} parent=0 // pred_fallthru
    _
  // Predicated region
  $region22: #{lovasz_softmax_loss.3} parent=0 // pred_check
    _
  $region23: #{lovasz_softmax_loss.3} parent=0 // pred_check_branch
    %567 = sbr.rel (0) target = $region25
  $region24: #{lovasz_softmax_loss.3} parent=0 // pred_region
    _
  $region25: #{lovasz_softmax_loss.3} parent=0 // pred_fallthru
    _
  // Predicated region
  $region26: #{lovasz_softmax_loss.3} parent=0 // pred_check
    _
  $region27: #{lovasz_softmax_loss.3} parent=0 // pred_check_branch
    %569 = sbr.rel (0) target = $region29
  $region28: #{lovasz_softmax_loss.3} parent=0 // pred_region
    _
  $region29: #{lovasz_softmax_loss.3} parent=0 // pred_fallthru
    _

</llo_original>
